<compile_context>
chip_gen: v5e
topology: v5e:2x2
jax: 0.10.0
libtpu: 0.0.40
codegen_flags: <defaults>
</compile_context>

<pallas_src>
import jax
import jax.numpy as jnp
from jax.experimental import pallas as pl
from jax.experimental.pallas import tpu as pltpu


def _round_up(x, m):
    return ((x + m - 1) // m) * m


def _make_loss_kernel(B, n, tile_b, tile_n, needs_row_mask, needs_col_mask):
    def kernel(yp_ref, y0_ref, out_ref):
        bi = pl.program_id(0)
        ni = pl.program_id(1)

        # Output block (8, tile_n) is indexed by bi only -> stays VMEM-resident
        # across the ni (reduction) axis; zero it at the start of each bi row.
        @pl.when(ni == 0)
        def _():
            out_ref[...] = jnp.zeros_like(out_ref)

        x = yp_ref[...].astype(jnp.float32)      # (tile_b, tile_n)
        t = y0_ref[...].astype(jnp.float32)      # (tile_b, 1) -> lane broadcast

        # --- smooth L1 (beta = 1), elementwise ---
        d = x - t
        ad = jnp.abs(d)
        sl1 = jnp.where(ad < 1.0, 0.5 * d * d, ad - 0.5)

        # --- BCE with logits (C = 1 soft-margin), stable canonical form ---
        bce = jnp.maximum(x, 0.0) - x * t + jnp.log1p(jnp.exp(-jnp.abs(x)))

        # 0.5 * (sl1 + bce) scale and 1/N are folded into the wrapper.
        elt = sl1 + bce

        def accumulate(e):
            # Fold tile_b rows into 8 rows using aligned sublane-group slices:
            # pure vreg-to-vreg VALU adds, no XLU / relayout in the inner loop.
            part = e[0:8, :]
            for g in range(1, tile_b // 8):
                part = part + e[g * 8:(g + 1) * 8, :]
            out_ref[...] += part

        if not (needs_row_mask or needs_col_mask):
            accumulate(elt)
        else:
            # Only boundary tiles pay for the mask.
            edge = None
            if needs_row_mask:
                edge = bi == pl.num_programs(0) - 1
            if needs_col_mask:
                c = ni == pl.num_programs(1) - 1
                edge = c if edge is None else jnp.logical_or(edge, c)

            @pl.when(edge)
            def _():
                valid = None
                if needs_row_mask:
                    rows = bi * tile_b + jax.lax.broadcasted_iota(
                        jnp.int32, (tile_b, tile_n), 0)
                    valid = rows < B
                if needs_col_mask:
                    cols = ni * tile_n + jax.lax.broadcasted_iota(
                        jnp.int32, (tile_b, tile_n), 1)
                    cm = cols < n
                    valid = cm if valid is None else jnp.logical_and(valid, cm)
                # Mask AFTER computing elt: garbage in the undefined edge lanes
                # (possibly Inf/NaN) is discarded by the select.
                accumulate(jnp.where(valid, elt, 0.0))

            @pl.when(jnp.logical_not(edge))
            def _():
                accumulate(elt)

    return kernel


@jax.jit
def loss_fuc(y_pred, y0):
    """y_pred: (N, 1) logits, y0: (B, 1) labels with N % B == 0. Returns scalar."""
    N = y_pred.shape[0]
    B = y0.shape[0]
    assert N % B == 0, "y_pred rows must be a multiple of y0 rows"
    n = N // B

    # (B, n) view of y_pred: element [b, j] has target y0[b] (free reshape).
    yp2d = jnp.reshape(y_pred, (B, n))
    y0c = jnp.reshape(y0, (B, 1))

    # Lane-dense tiles, multiples of (8, 128); no host-side padding.
    tile_b = min(256, _round_up(B, 8))
    tile_n = min(2048, _round_up(n, 128))
    grid_b = pl.cdiv(B, tile_b)
    grid_n = pl.cdiv(n, tile_n)
    needs_row_mask = (B % tile_b) != 0
    needs_col_mask = (n % tile_n) != 0

    kernel = _make_loss_kernel(B, n, tile_b, tile_n,
                               needs_row_mask, needs_col_mask)

    partials = pl.pallas_call(
        kernel,
        out_shape=jax.ShapeDtypeStruct((grid_b * 8, tile_n), jnp.float32),
        grid_spec=pltpu.PrefetchScalarGridSpec(
            num_scalar_prefetch=0,
            grid=(grid_b, grid_n),
            in_specs=[
                pl.BlockSpec((tile_b, tile_n), lambda bi, ni: (bi, ni)),
                pl.BlockSpec((tile_b, 1), lambda bi, ni: (bi, 0)),
            ],
            out_specs=pl.BlockSpec((8, tile_n), lambda bi, ni: (bi, 0)),
        ),
        compiler_params=pltpu.CompilerParams(
            # bi blocks are independent partial sums -> shardable across the two
            # TensorCores on v7x; ni is the reduction axis.
            dimension_semantics=("parallel", "arbitrary"),
        ),
    )(yp2d, y0c)

    # Final tiny reduction + folded scales: 0.5 * (sum(sl1) + sum(bce)) / N.
    return jnp.sum(partials) * jnp.float32(0.5 / N)


def _reference_loss(y_pred, y0):
    """Pure-JAX reference matching the PyTorch forward."""
    N = y_pred.shape[0]
    n = N // y0.shape[0]
    target = jnp.reshape(jnp.tile(y0, (1, n)), (-1, 1)).astype(jnp.float32)
    yp = jnp.reshape(y_pred, (-1, 1)).astype(jnp.float32)
    d = yp - target
    ad = jnp.abs(d)
    sl1 = jnp.mean(jnp.where(ad < 1.0, 0.5 * d * d, ad - 0.5))
    bce = jnp.mean(
        -(target * jax.nn.log_sigmoid(yp)
          + (1.0 - target) * jax.nn.log_sigmoid(-yp)))
    return 0.5 * sl1 + 0.5 * bce


if __name__ == "__main__":
    key = jax.random.PRNGKey(0)
    k1, k2, k3, k4, k5, k6 = jax.random.split(key, 6)

    # Case 1: the module's tiny shapes (B=4, n=4) -> single (8,128) block,
    # both edge masks active.
    B, n = 4, 4
    y_pred = jax.random.normal(k1, (B * n, 1), dtype=jnp.float32)
    y0 = jax.random.bernoulli(k2, 0.5, (B, 1)).astype(jnp.float32)
    loss = jax.block_until_ready(loss_fuc(y_pred, y0))
    ref = jax.block_until_ready(_reference_loss(y_pred, y0))
    assert jnp.allclose(loss, ref, atol=1e-5, rtol=1e-5), (loss, ref)

    # Case 2: misaligned shapes exercising the ni-accumulation and both masks
    # (B=20 -> tile_b=24, n=5000 -> tile_n=2048, grid (1, 3)).
    B2, n2 = 20, 5000
    y_pred2 = jax.random.normal(k3, (B2 * n2, 1), dtype=jnp.float32)
    y02 = jax.random.bernoulli(k4, 0.5, (B2, 1)).astype(jnp.float32)
    loss2 = jax.block_until_ready(loss_fuc(y_pred2, y02))
    ref2 = jax.block_until_ready(_reference_loss(y_pred2, y02))
    assert jnp.allclose(loss2, ref2, atol=1e-5, rtol=1e-5), (loss2, ref2)

    # Case 3: multiple bi blocks (per-bi parallel partials) with a row-edge mask
    # (B=300 -> grid_b=2, n=640 -> single full-width column tile).
    B3, n3 = 300, 640
    y_pred3 = jax.random.normal(k5, (B3 * n3, 1), dtype=jnp.float32)
    y03 = jax.random.bernoulli(k6, 0.5, (B3, 1)).astype(jnp.float32)
    loss3 = jax.block_until_ready(loss_fuc(y_pred3, y03))
    ref3 = jax.block_until_ready(_reference_loss(y_pred3, y03))
    assert jnp.allclose(loss3, ref3, atol=1e-5, rtol=1e-5), (loss3, ref3)

    print("KERNEL_OK")
</pallas_src>

<mosaic_0001>
module attributes {stable_mosaic.version = 11 : i64} {
  func.func @kernel(%arg0: i32, %arg1: i32, %arg2: memref<8x128xf32, #tpu.memory_space<vmem>>, %arg3: memref<8x1xf32, #tpu.memory_space<vmem>>, %arg4: memref<8x128xf32, #tpu.memory_space<vmem>>) attributes {dimension_semantics = [#tpu.dimension_semantics<parallel>, #tpu.dimension_semantics<arbitrary>], iteration_bounds = array<i64: 1, 1>, scalar_prefetch = 0 : i64, scratch_operands = 0 : i64, tpu.core_type = #tpu.core_type<tc>, window_params = [{transform_indices = @transform_0, window_bounds = array<i64: 8, 128>}, {transform_indices = @transform_1, window_bounds = array<i64: 8, 1>}, {transform_indices = @transform_2, window_bounds = array<i64: 8, 128>}]} {
    %c0_i32 = arith.constant 0 : i32
    %0 = arith.cmpi eq, %arg1, %c0_i32 : i32
    %1 = arith.extui %0 : i1 to i32
    %c0_i32_0 = arith.constant 0 : i32
    %2 = arith.cmpi ne, %1, %c0_i32_0 : i32
    scf.if %2 {
      %cst_12 = arith.constant 0.000000e+00 : f32
      %36 = vector.broadcast %cst_12 : f32 to vector<8x128xf32>
      %c0_13 = arith.constant 0 : index
      %c0_14 = arith.constant 0 : index
      %37 = vector.load %arg4[%c0_13, %c0_14] : memref<8x128xf32, #tpu.memory_space<vmem>>, vector<8x128xf32>
      tpu.vector_store %arg4[%c0_13, %c0_14], %36 {strides = array<i32>} : memref<8x128xf32, #tpu.memory_space<vmem>>, vector<8x128xf32>,
    } else {
    }
    %c0 = arith.constant 0 : index
    %c0_1 = arith.constant 0 : index
    %3 = vector.load %arg2[%c0, %c0_1] : memref<8x128xf32, #tpu.memory_space<vmem>>, vector<8x128xf32>
    %c0_2 = arith.constant 0 : index
    %c0_3 = arith.constant 0 : index
    %4 = vector.load %arg3[%c0_2, %c0_3] : memref<8x1xf32, #tpu.memory_space<vmem>>, vector<8x1xf32>
    %5 = vector.broadcast %4 : vector<8x1xf32> to vector<8x128xf32>
    %6 = arith.subf %3, %5 : vector<8x128xf32>
    %7 = math.absf %6 : vector<8x128xf32>
    %cst = arith.constant 1.000000e+00 : f32
    %8 = vector.broadcast %cst : f32 to vector<8x128xf32>
    %9 = arith.cmpf olt, %7, %8 : vector<8x128xf32>
    %cst_4 = arith.constant 5.000000e-01 : f32
    %10 = vector.broadcast %cst_4 : f32 to vector<8x128xf32>
    %11 = arith.mulf %10, %6 : vector<8x128xf32>
    %12 = arith.mulf %11, %6 : vector<8x128xf32>
    %cst_5 = arith.constant 5.000000e-01 : f32
    %13 = vector.broadcast %cst_5 : f32 to vector<8x128xf32>
    %14 = arith.subf %7, %13 : vector<8x128xf32>
    %15 = arith.select %9, %12, %14 : vector<8x128xi1>, vector<8x128xf32>
    %cst_6 = arith.constant 0.000000e+00 : f32
    %16 = vector.broadcast %cst_6 : f32 to vector<8x128xf32>
    %17 = arith.maximumf %3, %16 : vector<8x128xf32>
    %18 = vector.broadcast %4 : vector<8x1xf32> to vector<8x128xf32>
    %19 = arith.mulf %3, %18 : vector<8x128xf32>
    %20 = arith.subf %17, %19 : vector<8x128xf32>
    %21 = math.absf %3 : vector<8x128xf32>
    %cst_7 = arith.constant 0.000000e+00 : f32
    %22 = vector.broadcast %cst_7 : f32 to vector<8x128xf32>
    %23 = arith.subf %22, %21 : vector<8x128xf32>
    %24 = math.exp %23 : vector<8x128xf32>
    %25 = math.log1p %24 : vector<8x128xf32>
    %26 = arith.addf %20, %25 : vector<8x128xf32>
    %27 = arith.addf %15, %26 : vector<8x128xf32>
    %c0_i32_8 = arith.constant 0 : i32
    %28 = arith.cmpi eq, %arg0, %c0_i32_8 : i32
    %c0_i32_9 = arith.constant 0 : i32
    %29 = arith.cmpi eq, %arg1, %c0_i32_9 : i32
    %30 = arith.ori %28, %29 : i1
    %31 = arith.extui %30 : i1 to i32
    %c0_i32_10 = arith.constant 0 : i32
    %32 = arith.cmpi ne, %31, %c0_i32_10 : i32
    scf.if %32 {
      %c8_i32 = arith.constant 8 : i32
      %36 = arith.muli %arg0, %c8_i32 : i32
      %37 = tpu.iota {dimensions = array<i32: 0>} : vector<8x128xi32>
      %38 = vector.broadcast %36 : i32 to vector<8x128xi32>
      %39 = arith.addi %38, %37 : vector<8x128xi32>
      %c4_i32 = arith.constant 4 : i32
      %40 = vector.broadcast %c4_i32 : i32 to vector<8x128xi32>
      %41 = arith.cmpi slt, %39, %40 : vector<8x128xi32>
      %c128_i32 = arith.constant 128 : i32
      %42 = arith.muli %arg1, %c128_i32 : i32
      %43 = tpu.iota {dimensions = array<i32: 1>} : vector<8x128xi32>
      %44 = vector.broadcast %42 : i32 to vector<8x128xi32>
      %45 = arith.addi %44, %43 : vector<8x128xi32>
      %c4_i32_12 = arith.constant 4 : i32
      %46 = vector.broadcast %c4_i32_12 : i32 to vector<8x128xi32>
      %47 = arith.cmpi slt, %45, %46 : vector<8x128xi32>
      %48 = arith.andi %41, %47 : vector<8x128xi1>
      %cst_13 = arith.constant 0.000000e+00 : f32
      %49 = vector.broadcast %cst_13 : f32 to vector<8x128xf32>
      %50 = arith.select %48, %27, %49 : vector<8x128xi1>, vector<8x128xf32>
      %c0_14 = arith.constant 0 : index
      %c0_15 = arith.constant 0 : index
      %51 = vector.load %arg4[%c0_14, %c0_15] : memref<8x128xf32, #tpu.memory_space<vmem>>, vector<8x128xf32>
      %52 = arith.addf %51, %50 : vector<8x128xf32>
      %c0_16 = arith.constant 0 : index
      %c0_17 = arith.constant 0 : index
      %53 = vector.load %arg4[%c0_16, %c0_17] : memref<8x128xf32, #tpu.memory_space<vmem>>, vector<8x128xf32>
      tpu.vector_store %arg4[%c0_16, %c0_17], %52 {strides = array<i32>} : memref<8x128xf32, #tpu.memory_space<vmem>>, vector<8x128xf32>,
    } else {
    }
    %true = arith.constant true
    %33 = arith.xori %30, %true : i1
    %34 = arith.extui %33 : i1 to i32
    %c0_i32_11 = arith.constant 0 : i32
    %35 = arith.cmpi ne, %34, %c0_i32_11 : i32
    scf.if %35 {
      %c0_12 = arith.constant 0 : index
      %c0_13 = arith.constant 0 : index
      %36 = vector.load %arg4[%c0_12, %c0_13] : memref<8x128xf32, #tpu.memory_space<vmem>>, vector<8x128xf32>
      %37 = arith.addf %36, %27 : vector<8x128xf32>
      %c0_14 = arith.constant 0 : index
      %c0_15 = arith.constant 0 : index
      %38 = vector.load %arg4[%c0_14, %c0_15] : memref<8x128xf32, #tpu.memory_space<vmem>>, vector<8x128xf32>
      tpu.vector_store %arg4[%c0_14, %c0_15], %37 {strides = array<i32>} : memref<8x128xf32, #tpu.memory_space<vmem>>, vector<8x128xf32>,
    } else {
    }
    return
  }
  func.func @transform_0(%arg0: i32, %arg1: i32) -> (i32, i32) {
    %c0_i32 = arith.constant 0 : i32
    return %arg0, %arg1 : i32, i32
  }
  func.func @transform_1(%arg0: i32, %arg1: i32) -> (i32, i32) {
    %c0_i32 = arith.constant 0 : i32
    %c0_i32_0 = arith.constant 0 : i32
    return %arg0, %c0_i32 : i32, i32
  }
  func.func @transform_2(%arg0: i32, %arg1: i32) -> (i32, i32) {
    %c0_i32 = arith.constant 0 : i32
    %c0_i32_0 = arith.constant 0 : i32
    return %arg0, %c0_i32 : i32, i32
  }
}

</mosaic_0001>

<llo_original>
// kernel: loss_fuc.1
$region0: #{loss_fuc.1}
  #allocation0 [shape = 'u32[]', space=smem, size = 0x4, offset = 0x4, fixed_abs, tag = 'smem constant byte address 0x4 - core index']
  #allocation1 [shape = 'u32[72,128]{1,0:T(1,128)}', space=vmem, size = 0x9000, scoped, tag = 'internal scratch']
  %s0 = inlined_call_operand.vmem [shape: f32[4,4], index: 0, kind: input, shape index: {}]
  %s1 = inlined_call_operand.vmem [shape: f32[4,1], index: 1, kind: input, shape index: {}]
  %s2 = inlined_call_operand.vmem [shape: f32[8,128], index: 2, kind: output, shape index: {}]
  %s3 = sld [smem:[#allocation0]]
  $region30: #{loss_fuc.1} parent=0
    _
  %s5 = ssub.s32 1, %s3
  %s6 = scalar_select 0, %s5, %s3
  // Predicated region
  $region2: #{loss_fuc.1} parent=0 // pred_check
    _
  $region3: #{loss_fuc.1} parent=0 // pred_check_branch
    %8 = sbr.rel (0) target = $region5
  $region4: #{loss_fuc.1} parent=0 // pred_region
    _
  $region5: #{loss_fuc.1} parent=0 // pred_fallthru
    _
  // Predicated region
  $region6: #{loss_fuc.1} parent=0 // pred_check
    _
  $region7: #{loss_fuc.1} parent=0 // pred_check_branch
    %10 = sbr.rel (0) target = $region9
  $region8: #{loss_fuc.1} parent=0 // pred_region
    _
  $region9: #{loss_fuc.1} parent=0 // pred_fallthru
    _
  %p11 = scmp.eq.s32.totalorder 0, 0
  // Predicated region
  $region10: #{loss_fuc.1} parent=0 // pred_check
    %p12 = pneg %p11
  $region11: #{loss_fuc.1} parent=0 // pred_check_branch
    %14 = sbr.rel (%p12) target = $region13
  $region12: #{loss_fuc.1} parent=0 // pred_region
    %15 = vst [vmem:[%s2] sm:$0xff] 0.0
  $region13: #{loss_fuc.1} parent=0 // pred_fallthru
    _
  %v16 = vld [vmem:[%s0] sm:$0xff]
  %v17 = vld [vmem:[%s1] sm:$0xff]
  %19 = vset.pattern.permute.xlu0 0
  %20 = vperm.xlu0 %19, %v17
  %v21 = vpop.permute.xlu0 %20
  %v23 = vsub.f32 %v16, %v21
  %v24 = vand.u32 2147483647, %v23
  %vm25 = vcmp.lt.f32.partialorder %v24, 1.0
  %v26 = vmul.f32 %v23, 0.5
  %v27 = vmul.f32 %v26, %v23
  %v28 = vsub.f32 %v24, 0.5
  %v29 = vsel %vm25, %v27, %v28
  %v30 = vmax.f32 %v16, 0.0
  %v31 = vmul.f32 %v16, %v21
  %v32 = vsub.f32 %v30, %v31
  %v33 = vand.u32 2147483647, %v16
  %v34 = vsub.f32 0.0, %v33
  %v35 = vmul.f32 %v34, 1.442695
  %v36 = vpow.pop %v35
  %v37 = vadd.f32 %v36, 1.0
  %v38 = vlog2.pop %v37
  %v39 = vmul.f32 %v38, 0.6931472
  %v40 = vmul.f32 -0.5, %v36
  %v41 = vadd.f32 %v40, 1.0
  %v42 = vmul.f32 %v41, %v36
  %v43 = vand.u32 2147483647, %v36
  %vm44 = vcmp.lt.f32.partialorder %v43, 0.0004427343
  %v45 = vsel %vm44, %v42, %v39
  %v46 = vadd.f32 %v32, %v45
  %v47 = vadd.f32 %v29, %v46
  %p48 = scmp.eq.s32.totalorder 0, 0
  %p49 = por %p48, %p11
  // Predicated region
  $region14: #{loss_fuc.1} parent=0 // pred_check
    %p50 = pneg %p49
  $region15: #{loss_fuc.1} parent=0 // pred_check_branch
    %52 = sbr.rel (%p50) target = $region17
  $region16: #{loss_fuc.1} parent=0 // pred_region
    %s53 = smul.u32 0, 8
    %v54 = vlaneseq
    %v55 = vshrl.u32 %v54, 7
    %v56 = vstv %s53
    %v57 = vadd.s32 %v56, %v55
    %vm58 = vcmp.lt.s32.totalorder %v57, 4
    %s59 = smul.u32 0, 128
    %v60 = vlaneseq
    %v61 = vand.u32 %v60, 127
    %v62 = vstv %s59
    %v63 = vadd.s32 %v62, %v61
    %vm64 = vcmp.lt.s32.totalorder %v63, 4
    %vm65 = vmand %vm58, %vm64
    %v66 = vsel %vm65, %v47, 0.0
    %v67 = vld [vmem:[%s2] sm:$0xff]
    %v68 = vadd.f32 %v67, %v66
    %69 = vst [vmem:[%s2] sm:$0xff] %v68
  $region17: #{loss_fuc.1} parent=0 // pred_fallthru
    _
  %p70 = pneg %p49
  // Predicated region
  $region18: #{loss_fuc.1} parent=0 // pred_check
    _
  $region19: #{loss_fuc.1} parent=0 // pred_check_branch
    %72 = sbr.rel (%p49) target = $region21
  $region20: #{loss_fuc.1} parent=0 // pred_region
    %v73 = vld [vmem:[%s2] sm:$0xff]
    %v74 = vadd.f32 %v73, %v47
    %75 = vst [vmem:[%s2] sm:$0xff] %v74
  $region21: #{loss_fuc.1} parent=0 // pred_fallthru
    _
  // Predicated region
  $region22: #{loss_fuc.1} parent=0 // pred_check
    _
  $region23: #{loss_fuc.1} parent=0 // pred_check_branch
    %77 = sbr.rel (0) target = $region25
  $region24: #{loss_fuc.1} parent=0 // pred_region
    _
  $region25: #{loss_fuc.1} parent=0 // pred_fallthru
    _
  // Predicated region
  $region26: #{loss_fuc.1} parent=0 // pred_check
    _
  $region27: #{loss_fuc.1} parent=0 // pred_check_branch
    %79 = sbr.rel (0) target = $region29
  $region28: #{loss_fuc.1} parent=0 // pred_region
    _
  $region29: #{loss_fuc.1} parent=0 // pred_fallthru
    _

</llo_original>
